<compile_context>
chip_gen: v5e
topology: v5e:2x2
jax: 0.10.0
libtpu: 0.0.40
codegen_flags: <defaults>
</compile_context>

<pallas_src>
import functools
import math

import jax
import jax.numpy as jnp
from jax.experimental import pallas as pl
from jax.experimental.pallas import tpu as pltpu


def _round_up(x, m):
    return ((x + m - 1) // m) * m


# -----------------------------------------------------------------------------
# Kernels
# -----------------------------------------------------------------------------
def ffn_kernel_resident(x_ref, w1_ref, b1_ref, w2_ref, b2_ref, o_ref):
    """Whole (padded) d_ff resident in VMEM: one fused pass per row tile."""
    xb = x_ref[...].astype(w1_ref.dtype)                  # f32 -> bf16 in VMEM
    h = jnp.dot(xb, w1_ref[...], preferred_element_type=jnp.float32)
    h = jnp.maximum(h + b1_ref[...], 0.0)                 # bias + ReLU in f32
    # TODO(synk): dropout omitted (inference / p=0 path); identity here.
    y = jnp.dot(h.astype(w2_ref.dtype), w2_ref[...],
                preferred_element_type=jnp.float32) + b2_ref[...]
    o_ref[...] = y.astype(o_ref.dtype)


def ffn_kernel_streamed_f32out(x_ref, w1_ref, b1_ref, w2_ref, b2_ref, o_ref):
    """d_ff streamed in bf-wide chunks; the f32 output block doubles as the
    accumulator (it is resident across the k axis)."""
    k = pl.program_id(1)
    xb = x_ref[...].astype(w1_ref.dtype)
    h = jnp.dot(xb, w1_ref[...], preferred_element_type=jnp.float32)
    h = jnp.maximum(h + b1_ref[...], 0.0)
    contrib = jnp.dot(h.astype(w2_ref.dtype), w2_ref[...],
                      preferred_element_type=jnp.float32)

    @pl.when(k == 0)
    def _():
        o_ref[...] = contrib

    @pl.when(k > 0)
    def _():
        o_ref[...] += contrib

    @pl.when(k == pl.num_programs(1) - 1)
    def _():
        o_ref[...] += b2_ref[...]


def ffn_kernel_streamed_acc(x_ref, w1_ref, b1_ref, w2_ref, b2_ref, o_ref,
                            acc_ref):
    """d_ff streamed; low-precision output needs a separate f32 accumulator."""
    k = pl.program_id(1)
    xb = x_ref[...].astype(w1_ref.dtype)
    h = jnp.dot(xb, w1_ref[...], preferred_element_type=jnp.float32)
    h = jnp.maximum(h + b1_ref[...], 0.0)
    contrib = jnp.dot(h.astype(w2_ref.dtype), w2_ref[...],
                      preferred_element_type=jnp.float32)

    @pl.when(k == 0)
    def _():
        acc_ref[...] = contrib

    @pl.when(k > 0)
    def _():
        acc_ref[...] += contrib

    @pl.when(k == pl.num_programs(1) - 1)
    def _():
        o_ref[...] = (acc_ref[...] + b2_ref[...]).astype(o_ref.dtype)


# -----------------------------------------------------------------------------
# Sizing helpers
# -----------------------------------------------------------------------------
def _vmem_capacity_bytes():
    try:
        return int(pltpu.get_tpu_info().vmem_capacity_bytes)
    except Exception:
        kind = ""
        try:
            kind = jax.devices()[0].device_kind.lower()
        except Exception:
            pass
        if "v2" in kind or "v3" in kind:
            return 16 * 1024 * 1024
        if "v4" in kind or "v5" in kind or "v6" in kind:
            return 128 * 1024 * 1024
        return 64 * 1024 * 1024        # conservative default (v7x-class)


def _vmem_estimate(bm, dm_pad, bf, wsz, xsz, osz, with_acc_scratch):
    """Rough VMEM footprint (bytes): double-buffered tiles + intermediates."""
    return (2 * bm * dm_pad * xsz          # x input tiles
            + 2 * dm_pad * bf * wsz        # W1 tile buffers
            + 2 * bf * dm_pad * wsz        # W2 tile buffers
            + 2 * 8 * (bf + dm_pad) * 4    # bias tiles (sublane-padded to 8)
            + 2 * bm * dm_pad * osz        # output tiles
            + bm * bf * 4                  # h intermediate (f32)
            + 2 * bm * dm_pad * 4          # 2nd-matmul result / copies
            + (bm * dm_pad * 4 if with_acc_scratch else 0))


def _choose_bf(dff_pad, block_ff):
    """Largest MXU-friendly tile along d_ff that divides the padded width."""
    for cand in (4096, 2048, 1024, 768, 512, 384, 256, 128):
        if cand <= block_ff and dff_pad % cand == 0:
            return cand
    return dff_pad


# -----------------------------------------------------------------------------
# One-time parameter layout (hoisted out of the per-call path)
# -----------------------------------------------------------------------------
def prepare_ffn_params(w1, b1, w2, b2, *, compute_dtype=jnp.bfloat16):
    """Pad weights to (8,128)-aligned shapes and cast to the MXU compute dtype.
    Call once at init; the padded copies are what the kernel consumes."""
    d_model, d_ff = w1.shape
    dm_pad = _round_up(d_model, 128)
    dff_pad = _round_up(d_ff, 256 if d_ff >= 256 else 128)
    w1_p = jnp.zeros((dm_pad, dff_pad), compute_dtype).at[:d_model, :d_ff].set(
        w1.astype(compute_dtype))
    w2_p = jnp.zeros((dff_pad, dm_pad), compute_dtype).at[:d_ff, :d_model].set(
        w2.astype(compute_dtype))
    b1_p = jnp.zeros((1, dff_pad), jnp.float32).at[0, :d_ff].set(
        b1.astype(jnp.float32))
    b2_p = jnp.zeros((1, dm_pad), jnp.float32).at[0, :d_model].set(
        b2.astype(jnp.float32))
    return w1_p, b1_p, w2_p, b2_p


# -----------------------------------------------------------------------------
# Forward
# -----------------------------------------------------------------------------
def positionwise_ffn_apply(xs, w1_p, b1_p, w2_p, b2_p, *,
                           block_rows=512, block_ff=1024, weight_resident=None):
    """xs: (..., d_model). Weights must come from prepare_ffn_params
    (padded, (in, out) layout). Returns an array shaped like xs."""
    lead = xs.shape[:-1]
    d_model = xs.shape[-1]
    N = int(math.prod(lead)) if lead else 1
    dm_pad, dff_pad = w1_p.shape
    out_dtype = xs.dtype

    wsz = jnp.dtype(w1_p.dtype).itemsize
    xsz = jnp.dtype(xs.dtype).itemsize
    osz = jnp.dtype(out_dtype).itemsize
    f32_out = out_dtype == jnp.float32

    vmem_cap = _vmem_capacity_bytes()
    vmem_budget = (vmem_cap * 3) // 4      # ~48 MiB on v7x, ~96 MiB on v5e/v6e

    # --- row tile --------------------------------------------------------
    bm = min(_round_up(block_rows, 8), _round_up(N, 8))

    # --- weight-resident fast path? ---------------------------------------
    resident = weight_resident
    bf = dff_pad
    if resident is None or resident:
        bm_r = bm
        while (bm_r > 128 and
               _vmem_estimate(bm_r, dm_pad, dff_pad, wsz, xsz, osz, False)
               > vmem_budget):
            bm_r = max(128, (bm_r // 2 // 8) * 8)
        fits = (_vmem_estimate(bm_r, dm_pad, dff_pad, wsz, xsz, osz, False)
                <= vmem_budget)
        if fits or resident:
            resident = True
            bm = bm_r
        else:
            resident = False

    if not resident:
        bf = _choose_bf(dff_pad, _round_up(block_ff, 128))
        while (bm > 128 and
               _vmem_estimate(bm, dm_pad, bf, wsz, xsz, osz, not f32_out)
               > vmem_budget):
            bm = max(128, (bm // 2 // 8) * 8)

    # Give the "parallel" row axis >= 2 tiles for large N so megacore parts
    # (v7x: 2 TensorCores) both get work.
    if -(-N // bm) == 1 and N > 256:
        bm = _round_up(-(-N // 2), 8)

    n_pad = _round_up(N, bm)
    n_row_tiles = n_pad // bm

    # --- pad x only when necessary; keep x in its original dtype ------------
    x2d = xs.reshape(N, d_model)
    if n_pad != N or dm_pad != d_model:
        x_p = jnp.zeros((n_pad, dm_pad), xs.dtype).at[:N, :d_model].set(x2d)
    else:
        x_p = x2d

    vmem_est = _vmem_estimate(bm, dm_pad, bf, wsz, xsz, osz,
                              (not resident) and (not f32_out))
    vmem_limit = int(min(vmem_budget,
                         max(min(32 * 1024 * 1024, vmem_budget), 2 * vmem_est)))

    w_passes = 1 if resident else n_row_tiles
    cost = pl.CostEstimate(
        flops=4 * N * dm_pad * dff_pad,
        transcendentals=0,
        bytes_accessed=int(x_p.size * xsz
                           + w_passes * (w1_p.size + w2_p.size) * wsz
                           + (b1_p.size + b2_p.size) * 4
                           + n_pad * dm_pad * osz),
    )

    if resident:
        grid = (n_row_tiles,)
        in_specs = [
            pl.BlockSpec((bm, dm_pad), lambda i: (i, 0)),        # x row tile
            pl.BlockSpec((dm_pad, dff_pad), lambda i: (0, 0)),   # W1 (resident)
            pl.BlockSpec((1, dff_pad), lambda i: (0, 0)),        # b1 (resident)
            pl.BlockSpec((dff_pad, dm_pad), lambda i: (0, 0)),   # W2 (resident)
            pl.BlockSpec((1, dm_pad), lambda i: (0, 0)),         # b2 (resident)
        ]
        out_specs = pl.BlockSpec((bm, dm_pad), lambda i: (i, 0))
        kernel = ffn_kernel_resident
        scratch_shapes = []
        dims = ("parallel",)
    else:
        grid = (n_row_tiles, dff_pad // bf)
        in_specs = [
            pl.BlockSpec((bm, dm_pad), lambda i, k: (i, 0)),     # x row tile
            pl.BlockSpec((dm_pad, bf), lambda i, k: (0, k)),     # W1 column tile
            pl.BlockSpec((1, bf), lambda i, k: (0, k)),          # b1 tile
            pl.BlockSpec((bf, dm_pad), lambda i, k: (k, 0)),     # W2 row tile
            pl.BlockSpec((1, dm_pad), lambda i, k: (0, 0)),      # b2 (constant)
        ]
        out_specs = pl.BlockSpec((bm, dm_pad), lambda i, k: (i, 0))
        if f32_out:
            kernel = ffn_kernel_streamed_f32out
            scratch_shapes = []
        else:
            kernel = ffn_kernel_streamed_acc
            scratch_shapes = [pltpu.VMEM((bm, dm_pad), jnp.float32)]
        dims = ("parallel", "arbitrary")

    out_p = pl.pallas_call(
        kernel,
        out_shape=jax.ShapeDtypeStruct((n_pad, dm_pad), out_dtype),
        grid_spec=pltpu.PrefetchScalarGridSpec(
            num_scalar_prefetch=0,
            grid=grid,
            in_specs=in_specs,
            out_specs=out_specs,
            scratch_shapes=scratch_shapes,
        ),
        compiler_params=pltpu.CompilerParams(
            dimension_semantics=dims,
            vmem_limit_bytes=vmem_limit,
        ),
        cost_estimate=cost,
    )(x_p, w1_p, b1_p, w2_p, b2_p)

    return out_p[:N, :d_model].reshape(*lead, d_model)


def init_linear_params(key, in_features, out_features, dtype=jnp.float32):
    """Match nn.Linear default init: U(-1/sqrt(fan_in), 1/sqrt(fan_in))."""
    kw, kb = jax.random.split(key)
    bound = 1.0 / (in_features ** 0.5)
    # Stored as (in, out) so the kernel computes x @ W (PyTorch stores (out, in)).
    w = jax.random.uniform(kw, (in_features, out_features), dtype,
                           minval=-bound, maxval=bound)
    b = jax.random.uniform(kb, (out_features,), dtype,
                           minval=-bound, maxval=bound)
    return w, b


if __name__ == "__main__":
    B, T = 2, 8
    d_model, d_ff = 32, 64

    key = jax.random.PRNGKey(0)
    kx, k1, k2 = jax.random.split(key, 3)

    xs = jax.random.normal(kx, (B, T, d_model), jnp.float32)
    w1, b1 = init_linear_params(k1, d_model, d_ff)
    w2, b2 = init_linear_params(k2, d_ff, d_model)

    # One-time weight layout (hoisted out of the per-call path).
    params = prepare_ffn_params(w1, b1, w2, b2)

    # Pure-JAX f32 reference (kernel matmuls run in bf16 -> loosened tolerance).
    ref = jnp.maximum(xs @ w1 + b1, 0.0) @ w2 + b2

    # 1) Auto path (weight-resident here).
    ffn = jax.jit(positionwise_ffn_apply)
    out = jax.block_until_ready(ffn(xs, *params))
    assert out.shape == (B, T, d_model)
    assert jnp.allclose(out, ref, atol=5e-2, rtol=5e-2), (
        float(jnp.max(jnp.abs(out - ref))))

    # 2) Forced streamed (k-tiled) path, f32 output (accumulates into o_ref).
    ffn_stream = jax.jit(
        functools.partial(positionwise_ffn_apply, weight_resident=False))
    out_s = jax.block_until_ready(ffn_stream(xs, *params))
    assert jnp.allclose(out_s, ref, atol=5e-2, rtol=5e-2), (
        float(jnp.max(jnp.abs(out_s - ref))))

    # 3) Forced streamed path, bf16 output (uses the f32 scratch accumulator).
    out_bf = jax.block_until_ready(ffn_stream(xs.astype(jnp.bfloat16), *params))
    assert jnp.allclose(out_bf.astype(jnp.float32), ref, atol=1e-1, rtol=1e-1), (
        float(jnp.max(jnp.abs(out_bf.astype(jnp.float32) - ref))))

    print("KERNEL_OK")
</pallas_src>

<mosaic_0001>
module attributes {stable_mosaic.version = 11 : i64} {
  func.func @ffn_kernel_resident(%arg0: i32, %arg1: memref<16x128xf32, #tpu.memory_space<vmem>>, %arg2: memref<128x128xbf16, #tpu.memory_space<vmem>>, %arg3: memref<1x128xf32, #tpu.memory_space<vmem>>, %arg4: memref<128x128xbf16, #tpu.memory_space<vmem>>, %arg5: memref<1x128xf32, #tpu.memory_space<vmem>>, %arg6: memref<16x128xf32, #tpu.memory_space<vmem>>) attributes {dimension_semantics = [#tpu.dimension_semantics<parallel>], iteration_bounds = array<i64: 1>, scalar_prefetch = 0 : i64, scratch_operands = 0 : i64, tpu.core_type = #tpu.core_type<tc>, window_params = [{transform_indices = @transform_0, window_bounds = array<i64: 16, 128>}, {pipeline_mode = #tpu.pipeline_mode<synchronous>, transform_indices = @transform_1, window_bounds = array<i64: 128, 128>}, {pipeline_mode = #tpu.pipeline_mode<synchronous>, transform_indices = @transform_2, window_bounds = array<i64: 1, 128>}, {pipeline_mode = #tpu.pipeline_mode<synchronous>, transform_indices = @transform_3, window_bounds = array<i64: 128, 128>}, {pipeline_mode = #tpu.pipeline_mode<synchronous>, transform_indices = @transform_4, window_bounds = array<i64: 1, 128>}, {transform_indices = @transform_5, window_bounds = array<i64: 16, 128>}]} {
    %c0 = arith.constant 0 : index
    %c0_0 = arith.constant 0 : index
    %0 = vector.load %arg1[%c0, %c0_0] : memref<16x128xf32, #tpu.memory_space<vmem>>, vector<16x128xf32>
    %1 = arith.truncf %0 : vector<16x128xf32> to vector<16x128xbf16>
    %c0_1 = arith.constant 0 : index
    %c0_2 = arith.constant 0 : index
    %2 = vector.load %arg2[%c0_1, %c0_2] : memref<128x128xbf16, #tpu.memory_space<vmem>>, vector<128x128xbf16>
    %cst = arith.constant dense<0.000000e+00> : vector<16x128xf32>
    %3 = tpu.matmul %1, %2, %cst {dimension_numbers = #tpu.dot_dimension_numbers<[1], [0], [0], [1], [0, 0, 1, 1], [], []>} : vector<16x128xbf16>, vector<128x128xbf16>, vector<16x128xf32> -> vector<16x128xf32>
    %c0_3 = arith.constant 0 : index
    %c0_4 = arith.constant 0 : index
    %4 = vector.load %arg3[%c0_3, %c0_4] : memref<1x128xf32, #tpu.memory_space<vmem>>, vector<1x128xf32>
    %5 = vector.broadcast %4 : vector<1x128xf32> to vector<16x128xf32>
    %6 = arith.addf %3, %5 : vector<16x128xf32>
    %cst_5 = arith.constant 0.000000e+00 : f32
    %7 = vector.broadcast %cst_5 : f32 to vector<16x128xf32>
    %8 = arith.maximumf %6, %7 : vector<16x128xf32>
    %9 = arith.truncf %8 : vector<16x128xf32> to vector<16x128xbf16>
    %c0_6 = arith.constant 0 : index
    %c0_7 = arith.constant 0 : index
    %10 = vector.load %arg4[%c0_6, %c0_7] : memref<128x128xbf16, #tpu.memory_space<vmem>>, vector<128x128xbf16>
    %cst_8 = arith.constant dense<0.000000e+00> : vector<16x128xf32>
    %11 = tpu.matmul %9, %10, %cst_8 {dimension_numbers = #tpu.dot_dimension_numbers<[1], [0], [0], [1], [0, 0, 1, 1], [], []>} : vector<16x128xbf16>, vector<128x128xbf16>, vector<16x128xf32> -> vector<16x128xf32>
    %c0_9 = arith.constant 0 : index
    %c0_10 = arith.constant 0 : index
    %12 = vector.load %arg5[%c0_9, %c0_10] : memref<1x128xf32, #tpu.memory_space<vmem>>, vector<1x128xf32>
    %13 = vector.broadcast %12 : vector<1x128xf32> to vector<16x128xf32>
    %14 = arith.addf %11, %13 : vector<16x128xf32>
    %c0_11 = arith.constant 0 : index
    %c0_12 = arith.constant 0 : index
    %15 = vector.load %arg6[%c0_11, %c0_12] : memref<16x128xf32, #tpu.memory_space<vmem>>, vector<16x128xf32>
    tpu.vector_store %arg6[%c0_11, %c0_12], %14 {strides = array<i32>} : memref<16x128xf32, #tpu.memory_space<vmem>>, vector<16x128xf32>,
    return
  }
  func.func @transform_0(%arg0: i32) -> (i32, i32) {
    %c0_i32 = arith.constant 0 : i32
    %c0_i32_0 = arith.constant 0 : i32
    return %arg0, %c0_i32 : i32, i32
  }
  func.func @transform_1(%arg0: i32) -> (i32, i32) {
    %c0_i32 = arith.constant 0 : i32
    %c0_i32_0 = arith.constant 0 : i32
    %c0_i32_1 = arith.constant 0 : i32
    return %c0_i32, %c0_i32_0 : i32, i32
  }
  func.func @transform_2(%arg0: i32) -> (i32, i32) {
    %c0_i32 = arith.constant 0 : i32
    %c0_i32_0 = arith.constant 0 : i32
    %c0_i32_1 = arith.constant 0 : i32
    return %c0_i32, %c0_i32_0 : i32, i32
  }
  func.func @transform_3(%arg0: i32) -> (i32, i32) {
    %c0_i32 = arith.constant 0 : i32
    %c0_i32_0 = arith.constant 0 : i32
    %c0_i32_1 = arith.constant 0 : i32
    return %c0_i32, %c0_i32_0 : i32, i32
  }
  func.func @transform_4(%arg0: i32) -> (i32, i32) {
    %c0_i32 = arith.constant 0 : i32
    %c0_i32_0 = arith.constant 0 : i32
    %c0_i32_1 = arith.constant 0 : i32
    return %c0_i32, %c0_i32_0 : i32, i32
  }
  func.func @transform_5(%arg0: i32) -> (i32, i32) {
    %c0_i32 = arith.constant 0 : i32
    %c0_i32_0 = arith.constant 0 : i32
    return %arg0, %c0_i32 : i32, i32
  }
}

</mosaic_0001>

<llo_original>
// kernel: positionwise_ffn_apply.1
$region0: #{positionwise_ffn_apply.1}
  #allocation0 [shape = 'u32[]', space=smem, size = 0x4, offset = 0x4, fixed_abs, tag = 'smem constant byte address 0x4 - core index']
  #allocation1 [shape = 'u32[72,128]{1,0:T(1,128)}', space=vmem, size = 0x9000, scoped, tag = 'internal scratch']
  %s0 = inlined_call_operand.vmem [shape: f32[16,128], index: 0, kind: input, shape index: {}]
  %s1 = inlined_call_operand.vmem [shape: bf16[128,128], index: 1, kind: input, shape index: {}]
  %s2 = inlined_call_operand.vmem [shape: f32[1,128], index: 2, kind: input, shape index: {}]
  %s3 = inlined_call_operand.hbm [shape: bf16[128,128], index: 3, kind: input, shape index: {}]
  %s4 = inlined_call_operand.vmem [shape: f32[1,128], index: 4, kind: input, shape index: {}]
  %s5 = inlined_call_operand.vmem [shape: f32[16,128], index: 5, kind: output, shape index: {}]
  %s6 = sld [smem:[#allocation0]]
  $region34: #{positionwise_ffn_apply.1} parent=0
    _
  %s8 = ssub.s32 1, %s6
  %s9 = scalar_select 0, %s8, %s6
  $region1: #{positionwise_ffn_apply.1} parent=0
    #allocation2 [shape = 'u8[32768]{0}', space=vmem, size = 0x8000, scoped, tag = 'input window, operand 3, single buffered']
    #allocation3 [shape = 's32[1]{0}', space=sflag, size = 0x4, scoped, tag = 'scoped memory for positionwise_ffn_apply.1']
    %10 = vsyncpa [#allocation3], 0
    // Predicated region
    $region2: #{positionwise_ffn_apply.1} parent=1 // pred_check
      _
    $region3: #{positionwise_ffn_apply.1} parent=1 // pred_check_branch
      %12 = sbr.rel (0) target = $region5
    $region4: #{positionwise_ffn_apply.1} parent=1 // pred_region
      _
    $region5: #{positionwise_ffn_apply.1} parent=1 // pred_fallthru
      _
    // Predicated region
    $region6: #{positionwise_ffn_apply.1} parent=1 // pred_check
      _
    $region7: #{positionwise_ffn_apply.1} parent=1 // pred_check_branch
      %14 = sbr.rel (0) target = $region9
    $region8: #{positionwise_ffn_apply.1} parent=1 // pred_region
      _
    $region9: #{positionwise_ffn_apply.1} parent=1 // pred_fallthru
      _
    // Predicated region
    $region10: #{positionwise_ffn_apply.1} parent=1 // pred_check
      _
    $region11: #{positionwise_ffn_apply.1} parent=1 // pred_check_branch
      %16 = sbr.rel (0) target = $region13
    $region12: #{positionwise_ffn_apply.1} parent=1 // pred_region
      _
    $region13: #{positionwise_ffn_apply.1} parent=1 // pred_fallthru
      _
    // Predicated region
    $region14: #{positionwise_ffn_apply.1} parent=1 // pred_check
      _
    $region15: #{positionwise_ffn_apply.1} parent=1 // pred_check_branch
      %18 = sbr.rel (0) target = $region17
    $region16: #{positionwise_ffn_apply.1} parent=1 // pred_region
      %20 = vsyncadd [#allocation3], 0
      %s21 = sshll.u32 %s3, 4
      %s22 = int_to_ptr.hbm [resolvable:$true] %s21
      %s23 = sshll.u32 [#allocation2], 4
      %s24 = int_to_ptr.vmem [resolvable:$true] %s23
      %29 = dma.hbm_to_vmem [thread:$0]  %s22, 1024, %s24, [#allocation3], 64, 64, 4
    $region17: #{positionwise_ffn_apply.1} parent=1 // pred_fallthru
      _
    // Predicated region
    $region18: #{positionwise_ffn_apply.1} parent=1 // pred_check
      _
    $region19: #{positionwise_ffn_apply.1} parent=1 // pred_check_branch
      %31 = sbr.rel (0) target = $region21
    $region20: #{positionwise_ffn_apply.1} parent=1 // pred_region
      _
    $region21: #{positionwise_ffn_apply.1} parent=1 // pred_fallthru
      _
    // Predicated region
    $region22: #{positionwise_ffn_apply.1} parent=1 // pred_check
      _
    $region23: #{positionwise_ffn_apply.1} parent=1 // pred_check_branch
      %33 = sbr.rel (0) target = $region25
    $region24: #{positionwise_ffn_apply.1} parent=1 // pred_region
      %35 = dma.done [#allocation3], 1024
    $region25: #{positionwise_ffn_apply.1} parent=1 // pred_fallthru
      _
    %v36 = vld [vmem:[%s0] sm:$0xff]
    %v37 = vld [vmem:[%s0 + $0x8] sm:$0xff]
    %v38 = vpack.c.bf16 %v37, %v36
    %v39 = vld [vmem:[%s1] sm:$0xf]
    %v40 = vld [vmem:[%s1 + $0x4] sm:$0xf]
    %v41 = vld [vmem:[%s1 + $0x8] sm:$0xf]
    %v42 = vld [vmem:[%s1 + $0xc] sm:$0xf]
    %v43 = vld [vmem:[%s1 + $0x10] sm:$0xf]
    %v44 = vld [vmem:[%s1 + $0x14] sm:$0xf]
    %v45 = vld [vmem:[%s1 + $0x18] sm:$0xf]
    %v46 = vld [vmem:[%s1 + $0x1c] sm:$0xf]
    %v47 = vld [vmem:[%s1 + $0x20] sm:$0xf]
    %v48 = vld [vmem:[%s1 + $0x24] sm:$0xf]
    %v49 = vld [vmem:[%s1 + $0x28] sm:$0xf]
    %v50 = vld [vmem:[%s1 + $0x2c] sm:$0xf]
    %v51 = vld [vmem:[%s1 + $0x30] sm:$0xf]
    %v52 = vld [vmem:[%s1 + $0x34] sm:$0xf]
    %v53 = vld [vmem:[%s1 + $0x38] sm:$0xf]
    %v54 = vld [vmem:[%s1 + $0x3c] sm:$0xf]
    %v55 = vld [vmem:[%s2] sm:$0x1]
    %v57 = vperm.slane %v55, 0
    %v75 = vunpack.c.l.b16 %v39
    %v76 = vunpack.c.l.b16 %v40
    %v77 = vunpack.c.l.b16 %v41
    %v78 = vunpack.c.l.b16 %v42
    %v79 = vunpack.c.l.b16 %v43
    %v80 = vunpack.c.l.b16 %v44
    %v81 = vunpack.c.l.b16 %v45
    %v82 = vunpack.c.l.b16 %v46
    %v83 = vunpack.c.l.b16 %v47
    %v84 = vunpack.c.l.b16 %v48
    %v85 = vunpack.c.l.b16 %v49
    %v86 = vunpack.c.l.b16 %v50
    %v87 = vunpack.c.l.b16 %v51
    %v88 = vunpack.c.l.b16 %v52
    %v89 = vunpack.c.l.b16 %v53
    %v90 = vunpack.c.l.b16 %v54
    %v91 = vpack.c.b16 %v76, %v75
    %v92 = vpack.c.b16 %v78, %v77
    %v93 = vpack.c.b16 %v80, %v79
    %v94 = vpack.c.b16 %v82, %v81
    %v95 = vpack.c.b16 %v84, %v83
    %v96 = vpack.c.b16 %v86, %v85
    %v97 = vpack.c.b16 %v88, %v87
    %v98 = vpack.c.b16 %v90, %v89
    %107 = vmatpush.bf16.msra.mxu0 %v98
    %108 = vmatpush.bf16.msra.mxu0 %v97
    %109 = vmatpush.bf16.msra.mxu0 %v96
    %110 = vmatpush.bf16.msra.mxu0 %v95
    %111 = vmatpush.bf16.msra.mxu0 %v94
    %112 = vmatpush.bf16.msra.mxu0 %v93
    %113 = vmatpush.bf16.msra.mxu0 %v92
    %114 = vmatpush.bf16.msra.mxu0 %v91
    %115 = vmatmul.bf16.gmra.mxu0 %v38
    %v116 = vpop.f32.mrf.mxu0
    %v117 = vadd.f32 %v57, %v116
    %v118 = vpop.f32.mrf.mxu0
    %v119 = vadd.f32 %v57, %v118
    %120 = vdwg.mxu0
    %v121 = vmax.f32 %v117, 0.0
    %v122 = vmax.f32 %v119, 0.0
    %v123 = vpack.c.bf16 %v122, %v121
    %v124 = vld [vmem:[#allocation2] sm:$0xf]
    %v125 = vld [vmem:[#allocation2 + $0x4] sm:$0xf]
    %v126 = vld [vmem:[#allocation2 + $0x8] sm:$0xf]
    %v127 = vld [vmem:[#allocation2 + $0xc] sm:$0xf]
    %v128 = vld [vmem:[#allocation2 + $0x10] sm:$0xf]
    %v129 = vld [vmem:[#allocation2 + $0x14] sm:$0xf]
    %v130 = vld [vmem:[#allocation2 + $0x18] sm:$0xf]
    %v131 = vld [vmem:[#allocation2 + $0x1c] sm:$0xf]
    %v132 = vld [vmem:[#allocation2 + $0x20] sm:$0xf]
    %v133 = vld [vmem:[#allocation2 + $0x24] sm:$0xf]
    %v134 = vld [vmem:[#allocation2 + $0x28] sm:$0xf]
    %v135 = vld [vmem:[#allocation2 + $0x2c] sm:$0xf]
    %v136 = vld [vmem:[#allocation2 + $0x30] sm:$0xf]
    %v137 = vld [vmem:[#allocation2 + $0x34] sm:$0xf]
    %v138 = vld [vmem:[#allocation2 + $0x38] sm:$0xf]
    %v139 = vld [vmem:[#allocation2 + $0x3c] sm:$0xf]
    %v140 = vld [vmem:[%s4] sm:$0x1]
    %v142 = vperm.slane %v140, 0
    %v160 = vunpack.c.l.b16 %v124
    %v161 = vunpack.c.l.b16 %v125
    %v162 = vunpack.c.l.b16 %v126
    %v163 = vunpack.c.l.b16 %v127
    %v164 = vunpack.c.l.b16 %v128
    %v165 = vunpack.c.l.b16 %v129
    %v166 = vunpack.c.l.b16 %v130
    %v167 = vunpack.c.l.b16 %v131
    %v168 = vunpack.c.l.b16 %v132
    %v169 = vunpack.c.l.b16 %v133
    %v170 = vunpack.c.l.b16 %v134
    %v171 = vunpack.c.l.b16 %v135
    %v172 = vunpack.c.l.b16 %v136
    %v173 = vunpack.c.l.b16 %v137
    %v174 = vunpack.c.l.b16 %v138
    %v175 = vunpack.c.l.b16 %v139
    %v176 = vpack.c.b16 %v161, %v160
    %v177 = vpack.c.b16 %v163, %v162
    %v178 = vpack.c.b16 %v165, %v164
    %v179 = vpack.c.b16 %v167, %v166
    %v180 = vpack.c.b16 %v169, %v168
    %v181 = vpack.c.b16 %v171, %v170
    %v182 = vpack.c.b16 %v173, %v172
    %v183 = vpack.c.b16 %v175, %v174
    %192 = vmatpush.bf16.msra.mxu0 %v183
    %193 = vmatpush.bf16.msra.mxu0 %v182
    %194 = vmatpush.bf16.msra.mxu0 %v181
    %195 = vmatpush.bf16.msra.mxu0 %v180
    %196 = vmatpush.bf16.msra.mxu0 %v179
    %197 = vmatpush.bf16.msra.mxu0 %v178
    %198 = vmatpush.bf16.msra.mxu0 %v177
    %199 = vmatpush.bf16.msra.mxu0 %v176
    %200 = vmatmul.bf16.gmra.mxu0 %v123
    %v201 = vpop.f32.mrf.mxu0
    %v202 = vadd.f32 %v142, %v201
    %v203 = vpop.f32.mrf.mxu0
    %v204 = vadd.f32 %v142, %v203
    %205 = vdwg.mxu0
    %206 = vst [vmem:[%s5] sm:$0xff] %v202
    %207 = vst [vmem:[%s5 + $0x8] sm:$0xff] %v204
    // Predicated region
    $region26: #{positionwise_ffn_apply.1} parent=1 // pred_check
      _
    $region27: #{positionwise_ffn_apply.1} parent=1 // pred_check_branch
      %209 = sbr.rel (0) target = $region29
    $region28: #{positionwise_ffn_apply.1} parent=1 // pred_region
      _
    $region29: #{positionwise_ffn_apply.1} parent=1 // pred_fallthru
      _
    // Predicated region
    $region30: #{positionwise_ffn_apply.1} parent=1 // pred_check
      _
    $region31: #{positionwise_ffn_apply.1} parent=1 // pred_check_branch
      %211 = sbr.rel (0) target = $region33
    $region32: #{positionwise_ffn_apply.1} parent=1 // pred_region
      _
    $region33: #{positionwise_ffn_apply.1} parent=1 // pred_fallthru
      _
    %212 = vsyncpa [#allocation3], 1

</llo_original>
